<compile_context>
chip_gen: v6e
topology: v6e:2x2x1
jax: 0.10.0
libtpu: 0.0.40
codegen_flags: <defaults>
</compile_context>

<pallas_src>
import jax
import jax.numpy as jnp
from jax.experimental import pallas as pl
from jax.experimental.pallas import tpu as pltpu


# ----------------------------- kernel -----------------------------


def _make_kernel(has_noise, w_resident, tk):
    """Kernel over one (TB, TK) tile of the flattened (batch, n*h*w) inputs."""

    def kernel(*refs):
        if has_noise:
            x_ref, mw_ref, nz_ref, wfc_ref, bfc_ref, probs_ref = refs
        else:
            x_ref, mw_ref, wfc_ref, bfc_ref, probs_ref = refs
            nz_ref = None

        k = pl.program_id(1)

        # Exact sigmoid with a single EUP push: sigma(t) = 0.5 + 0.5*tanh(t/2).
        mw = mw_ref[...].astype(jnp.float32)
        mask0 = 0.5 + 0.5 * jnp.tanh(0.5 * mw)

        x = x_ref[...].astype(jnp.float32)
        if nz_ref is None:
            # Default path: noise == 0  =>  mod_x = x * mask0 (zero-noise stream elided).
            mod_x = x * mask0
        else:
            # x*m + noise*(1-m) == noise + (x - noise)*m ; nz is a (1, TK) row that
            # broadcasts across the TB batch rows inside the kernel.
            nz = nz_ref[...].astype(jnp.float32)
            mod_x = nz + (x - nz) * mask0

        if w_resident:
            # W lives fully in VMEM (constant index_map); slice the k-th reduction tile.
            k_start = pl.multiple_of(k * tk, 128)
            w_tile = wfc_ref[pl.ds(k_start, tk), :]
        else:
            w_tile = wfc_ref[...]

        # Partial logits on the MXU: bf16 operands, f32 accumulation (intentional
        # precision loss vs the f32 reference).
        partial = jnp.dot(mod_x.astype(jnp.bfloat16), w_tile,
                          preferred_element_type=jnp.float32)

        # Accumulate directly into the resident output block (no scratch accumulator).
        @pl.when(k == 0)
        def _init():
            probs_ref[...] = partial

        @pl.when(k > 0)
        def _acc():
            probs_ref[...] += partial

        @pl.when(k == pl.num_programs(1) - 1)
        def _finalize():
            logits = probs_ref[...] + bfc_ref[...]       # padded classes have bias -1e30
            m = jnp.max(logits, axis=-1, keepdims=True)
            e = jnp.exp(logits - m)
            # Exact divide for the softmax denominator (runs once per output tile;
            # approx reciprocal buys nothing here and would inject ~2^-12 rel error).
            probs_ref[...] = e / jnp.sum(e, axis=-1, keepdims=True)

    return kernel


# ----------------------------- tiling helpers -----------------------------


def _round_up(v, m):
    return (v + m - 1) // m * m


def _largest_divisor_tile(total_padded, max_tile, mult):
    """Largest tile <= max_tile that is a multiple of `mult` and divides total_padded."""
    cand = min(max_tile, total_padded)
    cand -= cand % mult
    cand = max(cand, mult)
    while cand > mult and total_padded % cand != 0:
        cand -= mult
    return cand


def _vmem_budget():
    """Generation-aware VMEM budget (bytes): ~75% of capacity, clamped to [32, 100] MiB.
    v5e/v6e (128 MiB) -> 96 MiB; v7x (64 MiB per TC) -> 48 MiB."""
    try:
        cap = pltpu.get_tpu_info().vmem_capacity_bytes
    except Exception:
        cap = 128 * 1024 * 1024
    return max(32 * 1024 * 1024, min(int(cap * 0.75), 100 * 1024 * 1024))


def _to_2d_bf16_padded(a, rows, cols):
    """Fuse reshape + bf16 cast into the (optional) pad copy; skip pad when aligned."""
    a2 = a.reshape(a.shape[0], -1).astype(jnp.bfloat16)
    pr, pc = rows - a2.shape[0], cols - a2.shape[1]
    if pr or pc:
        a2 = jnp.pad(a2, ((0, pr), (0, pc)))
    return a2


# ----------------------------- wrapper -----------------------------


def batch_masked_model_kcert_forward(x, mask_weights, w_fc, b_fc, noise_mean=None,
                                     *, max_tb=256, max_tk=2048):
    """x: (bs, n, h, w); mask_weights: (bs, 3, h, w) (K=1, leading K axis squeezed;
    the module's mask is fixed at 3 channels so n must equal 3 for the flattened
    elementwise product to match); w_fc: (n*h*w, C); b_fc: (C,);
    noise_mean: optional (n, h, w), broadcast over batch (None => zeros).
    Returns probs (bs, C)."""
    bs, n, h, w = x.shape
    d = n * h * w
    c = w_fc.shape[1]
    has_noise = noise_mean is not None

    # --- tile selection -------------------------------------------------
    b_pad = _round_up(bs, 8)
    tb_cap = max_tb
    if b_pad >= 16:
        # Guarantee >= 2 batch tiles so the "parallel" axis can shard across the two
        # TensorCores on v7x (harmless elsewhere: W is resident, so no extra traffic).
        tb_cap = min(tb_cap, max(8, (b_pad // 2) // 8 * 8))
    tb = _largest_divisor_tile(b_pad, tb_cap, 8)

    d_pad = _round_up(d, 128)
    tk = _largest_divisor_tile(d_pad, max_tk, 128)

    c_pad = _round_up(c, 128)

    budget = _vmem_budget()
    w_resident_bytes = d_pad * c_pad * 2                       # bf16
    w_resident = w_resident_bytes <= int(budget * 0.6)

    def _working_set(tk_):
        streams = 2 * 2 * tb * tk_ * 2                         # x + mw, double-buffered bf16
        if has_noise:
            streams += 2 * tk_ * 2                             # (1, tk) noise row
        wbytes = w_resident_bytes if w_resident else 2 * tk_ * c_pad * 2
        temps = 3 * tb * tk_ * 4                               # f32 mask0 / mod_x / upcasts
        out = 2 * tb * c_pad * 4 + 2 * c_pad * 4
        return streams + wbytes + temps + out

    while tk > 128 and _working_set(tk) > int(budget * 0.85):
        new_tk = _largest_divisor_tile(d_pad, tk - 128, 128)
        if new_tk >= tk:
            break
        tk = new_tk

    # --- operand prep (cast fused into the pad copy; pad skipped when aligned) ---
    x2 = _to_2d_bf16_padded(x, b_pad, d_pad)
    mw2 = _to_2d_bf16_padded(mask_weights, b_pad, d_pad)

    # W: zero-padded rows/cols (padded D / classes contribute nothing), streamed as bf16.
    wfc2 = w_fc.astype(jnp.bfloat16)
    if wfc2.shape != (d_pad, c_pad):
        wfc2 = jnp.pad(wfc2, ((0, d_pad - wfc2.shape[0]), (0, c_pad - wfc2.shape[1])))
    # Bias: padded classes get -1e30 so their softmax mass is exactly zero.
    bfc2 = jnp.full((1, c_pad), -1e30, dtype=jnp.float32)
    bfc2 = bfc2.at[0, :c].set(b_fc.astype(jnp.float32))

    inputs = [x2, mw2]
    in_specs = [
        pl.BlockSpec((tb, tk), lambda i, k: (i, k)),
        pl.BlockSpec((tb, tk), lambda i, k: (i, k)),
    ]
    if has_noise:
        nz2 = _to_2d_bf16_padded(noise_mean.reshape(1, -1), 1, d_pad)   # single row
        inputs.append(nz2)
        in_specs.append(pl.BlockSpec((1, tk), lambda i, k: (0, k)))     # ignores i
    inputs.append(wfc2)
    if w_resident:
        in_specs.append(pl.BlockSpec((d_pad, c_pad), lambda i, k: (0, 0)))  # DMA once
    else:
        in_specs.append(pl.BlockSpec((tk, c_pad), lambda i, k: (k, 0)))
    inputs.append(bfc2)
    in_specs.append(pl.BlockSpec((1, c_pad), lambda i, k: (0, 0)))

    probs_pad = pl.pallas_call(
        _make_kernel(has_noise, w_resident, tk),
        out_shape=jax.ShapeDtypeStruct((b_pad, c_pad), jnp.float32),
        grid=(b_pad // tb, d_pad // tk),
        in_specs=in_specs,
        out_specs=pl.BlockSpec((tb, c_pad), lambda i, k: (i, 0)),
        compiler_params=pltpu.CompilerParams(
            dimension_semantics=("parallel", "arbitrary"),
            vmem_limit_bytes=budget),
    )(*inputs)

    return probs_pad[:bs, :c]


# ----------------------------- reference & test -----------------------------


def _reference_forward(x, mask_weights, noise, w_fc, b_fc):
    mask0 = jax.nn.sigmoid(mask_weights)
    mod_x = x * mask0 + noise * (1.0 - mask0)
    bs = x.shape[0]
    logits = mod_x.reshape(bs, -1) @ w_fc + b_fc[None, :]
    return jax.nn.softmax(logits, axis=1)


if __name__ == "__main__":
    # Shapes implied by the module: mask has 3 channels => n=3; K=1, scale=1.
    bs, n, h, w = 2, 3, 16, 16
    num_classes = 10
    d = n * h * w

    key = jax.random.PRNGKey(0)
    kx, kw, kb, kn = jax.random.split(key, 4)

    x = jax.random.normal(kx, (bs, n, h, w), dtype=jnp.float32)

    # Module __init__: weights = zeros(1, bs, 3, h, w)  (K == 1)
    weights_param = jnp.zeros((1, bs, 3, h, w), dtype=jnp.float32)
    mask_weights = weights_param[0]                      # (bs, 3, h, w)

    # Deterministic synthetic "model": a linear classifier.
    w_fc = jax.random.normal(kw, (d, num_classes), dtype=jnp.float32) * 0.02
    b_fc = jax.random.normal(kb, (num_classes,), dtype=jnp.float32) * 0.1

    # --- default path: noise_mean is None -> noise == zeros (stream elided) ---
    probs = batch_masked_model_kcert_forward(x, mask_weights, w_fc, b_fc)
    probs = jax.block_until_ready(probs)
    ref = _reference_forward(x, mask_weights, jnp.zeros_like(x), w_fc, b_fc)
    assert probs.shape == (bs, num_classes)
    assert jnp.allclose(probs, ref, atol=5e-3, rtol=0.0), "mismatch (default path)"
    assert jnp.allclose(jnp.sum(probs, axis=1), 1.0, atol=1e-3)

    # --- noise_mean path: noise_mean has shape x[0].shape, broadcast over batch ---
    noise_mean = jax.random.normal(kn, (n, h, w), dtype=jnp.float32) * 0.5
    probs_n = batch_masked_model_kcert_forward(x, mask_weights, w_fc, b_fc,
                                               noise_mean=noise_mean)
    probs_n = jax.block_until_ready(probs_n)
    ref_n = _reference_forward(x, mask_weights,
                               jnp.broadcast_to(noise_mean, x.shape), w_fc, b_fc)
    assert jnp.allclose(probs_n, ref_n, atol=5e-3, rtol=0.0), "mismatch (noise path)"
    assert jnp.allclose(jnp.sum(probs_n, axis=1), 1.0, atol=1e-3)

    print("KERNEL_OK")
</pallas_src>

<mosaic_0001>
module attributes {stable_mosaic.version = 11 : i64} {
  func.func @kernel(%arg0: i32, %arg1: i32, %arg2: memref<8x768xbf16, #tpu.memory_space<vmem>>, %arg3: memref<8x768xbf16, #tpu.memory_space<vmem>>, %arg4: memref<768x128xbf16, #tpu.memory_space<vmem>>, %arg5: memref<1x128xf32, #tpu.memory_space<vmem>>, %arg6: memref<8x128xf32, #tpu.memory_space<vmem>>) attributes {dimension_semantics = [#tpu.dimension_semantics<parallel>, #tpu.dimension_semantics<arbitrary>], iteration_bounds = array<i64: 1, 1>, scalar_prefetch = 0 : i64, scratch_operands = 0 : i64, tpu.core_type = #tpu.core_type<tc>, window_params = [{transform_indices = @transform_0, window_bounds = array<i64: 8, 768>}, {transform_indices = @transform_1, window_bounds = array<i64: 8, 768>}, {pipeline_mode = #tpu.pipeline_mode<synchronous>, transform_indices = @transform_2, window_bounds = array<i64: 768, 128>}, {pipeline_mode = #tpu.pipeline_mode<synchronous>, transform_indices = @transform_3, window_bounds = array<i64: 1, 128>}, {transform_indices = @transform_4, window_bounds = array<i64: 8, 128>}]} {
    %c0 = arith.constant 0 : index
    %c0_0 = arith.constant 0 : index
    %0 = vector.load %arg3[%c0, %c0_0] : memref<8x768xbf16, #tpu.memory_space<vmem>>, vector<8x768xbf16>
    %1 = arith.extf %0 : vector<8x768xbf16> to vector<8x768xf32>
    %cst = arith.constant 5.000000e-01 : f32
    %2 = vector.broadcast %cst : f32 to vector<8x768xf32>
    %3 = arith.mulf %2, %1 : vector<8x768xf32>
    %4 = math.tanh %3 : vector<8x768xf32>
    %cst_1 = arith.constant 5.000000e-01 : f32
    %5 = vector.broadcast %cst_1 : f32 to vector<8x768xf32>
    %6 = arith.mulf %5, %4 : vector<8x768xf32>
    %cst_2 = arith.constant 5.000000e-01 : f32
    %7 = vector.broadcast %cst_2 : f32 to vector<8x768xf32>
    %8 = arith.addf %7, %6 : vector<8x768xf32>
    %c0_3 = arith.constant 0 : index
    %c0_4 = arith.constant 0 : index
    %9 = vector.load %arg2[%c0_3, %c0_4] : memref<8x768xbf16, #tpu.memory_space<vmem>>, vector<8x768xbf16>
    %10 = arith.extf %9 : vector<8x768xbf16> to vector<8x768xf32>
    %11 = arith.mulf %10, %8 : vector<8x768xf32>
    %c768_i32 = arith.constant 768 : i32
    %12 = arith.muli %arg1, %c768_i32 : i32
    %13 = tpu.assume_multiple %12, 128 : i32
    %14 = arith.index_cast %13 : i32 to index
    %c0_5 = arith.constant 0 : index
    %15 = vector.load %arg4[%14, %c0_5] : memref<768x128xbf16, #tpu.memory_space<vmem>>, vector<768x128xbf16>
    %16 = arith.truncf %11 : vector<8x768xf32> to vector<8x768xbf16>
    %cst_6 = arith.constant dense<0.000000e+00> : vector<8x128xf32>
    %17 = tpu.matmul %16, %15, %cst_6 {dimension_numbers = #tpu.dot_dimension_numbers<[1], [0], [0], [1], [0, 0, 1, 1], [], []>} : vector<8x768xbf16>, vector<768x128xbf16>, vector<8x128xf32> -> vector<8x128xf32>
    %c0_i32 = arith.constant 0 : i32
    %18 = arith.cmpi eq, %arg1, %c0_i32 : i32
    %19 = arith.extui %18 : i1 to i32
    %c0_i32_7 = arith.constant 0 : i32
    %20 = arith.cmpi ne, %19, %c0_i32_7 : i32
    scf.if %20 {
      %c0_12 = arith.constant 0 : index
      %c0_13 = arith.constant 0 : index
      %27 = vector.load %arg6[%c0_12, %c0_13] : memref<8x128xf32, #tpu.memory_space<vmem>>, vector<8x128xf32>
      tpu.vector_store %arg6[%c0_12, %c0_13], %17 {strides = array<i32>} : memref<8x128xf32, #tpu.memory_space<vmem>>, vector<8x128xf32>,
    } else {
    }
    %c0_i32_8 = arith.constant 0 : i32
    %21 = arith.cmpi sgt, %arg1, %c0_i32_8 : i32
    %22 = arith.extui %21 : i1 to i32
    %c0_i32_9 = arith.constant 0 : i32
    %23 = arith.cmpi ne, %22, %c0_i32_9 : i32
    scf.if %23 {
      %c0_12 = arith.constant 0 : index
      %c0_13 = arith.constant 0 : index
      %27 = vector.load %arg6[%c0_12, %c0_13] : memref<8x128xf32, #tpu.memory_space<vmem>>, vector<8x128xf32>
      %28 = arith.addf %27, %17 : vector<8x128xf32>
      %c0_14 = arith.constant 0 : index
      %c0_15 = arith.constant 0 : index
      %29 = vector.load %arg6[%c0_14, %c0_15] : memref<8x128xf32, #tpu.memory_space<vmem>>, vector<8x128xf32>
      tpu.vector_store %arg6[%c0_14, %c0_15], %28 {strides = array<i32>} : memref<8x128xf32, #tpu.memory_space<vmem>>, vector<8x128xf32>,
    } else {
    }
    %c0_i32_10 = arith.constant 0 : i32
    %24 = arith.cmpi eq, %arg1, %c0_i32_10 : i32
    %25 = arith.extui %24 : i1 to i32
    %c0_i32_11 = arith.constant 0 : i32
    %26 = arith.cmpi ne, %25, %c0_i32_11 : i32
    scf.if %26 {
      %c0_12 = arith.constant 0 : index
      %c0_13 = arith.constant 0 : index
      %27 = vector.load %arg6[%c0_12, %c0_13] : memref<8x128xf32, #tpu.memory_space<vmem>>, vector<8x128xf32>
      %c0_14 = arith.constant 0 : index
      %c0_15 = arith.constant 0 : index
      %28 = vector.load %arg5[%c0_14, %c0_15] : memref<1x128xf32, #tpu.memory_space<vmem>>, vector<1x128xf32>
      %29 = vector.broadcast %28 : vector<1x128xf32> to vector<8x128xf32>
      %30 = arith.addf %27, %29 : vector<8x128xf32>
      %cst_16 = arith.constant dense<0xFF800000> : vector<8xf32>
      %31 = vector.multi_reduction <maximumf>, %30, %cst_16 [1] : vector<8x128xf32> to vector<8xf32>
      %32 = vector.shape_cast %31 : vector<8xf32> to vector<8x1xf32>
      %33 = vector.broadcast %32 : vector<8x1xf32> to vector<8x128xf32>
      %34 = arith.subf %30, %33 : vector<8x128xf32>
      %35 = math.exp %34 : vector<8x128xf32>
      %cst_17 = arith.constant dense<0.000000e+00> : vector<8xf32>
      %36 = vector.multi_reduction <add>, %35, %cst_17 [1] : vector<8x128xf32> to vector<8xf32>
      %37 = vector.shape_cast %36 : vector<8xf32> to vector<8x1xf32>
      %38 = vector.broadcast %37 : vector<8x1xf32> to vector<8x128xf32>
      %39 = arith.divf %35, %38 : vector<8x128xf32>
      %c0_18 = arith.constant 0 : index
      %c0_19 = arith.constant 0 : index
      %40 = vector.load %arg6[%c0_18, %c0_19] : memref<8x128xf32, #tpu.memory_space<vmem>>, vector<8x128xf32>
      tpu.vector_store %arg6[%c0_18, %c0_19], %39 {strides = array<i32>} : memref<8x128xf32, #tpu.memory_space<vmem>>, vector<8x128xf32>,
    } else {
    }
    return
  }
  func.func @transform_0(%arg0: i32, %arg1: i32) -> (i32, i32) {
    %c0_i32 = arith.constant 0 : i32
    return %arg0, %arg1 : i32, i32
  }
  func.func @transform_1(%arg0: i32, %arg1: i32) -> (i32, i32) {
    %c0_i32 = arith.constant 0 : i32
    return %arg0, %arg1 : i32, i32
  }
  func.func @transform_2(%arg0: i32, %arg1: i32) -> (i32, i32) {
    %c0_i32 = arith.constant 0 : i32
    %c0_i32_0 = arith.constant 0 : i32
    %c0_i32_1 = arith.constant 0 : i32
    return %c0_i32, %c0_i32_0 : i32, i32
  }
  func.func @transform_3(%arg0: i32, %arg1: i32) -> (i32, i32) {
    %c0_i32 = arith.constant 0 : i32
    %c0_i32_0 = arith.constant 0 : i32
    %c0_i32_1 = arith.constant 0 : i32
    return %c0_i32, %c0_i32_0 : i32, i32
  }
  func.func @transform_4(%arg0: i32, %arg1: i32) -> (i32, i32) {
    %c0_i32 = arith.constant 0 : i32
    %c0_i32_0 = arith.constant 0 : i32
    return %arg0, %c0_i32 : i32, i32
  }
}

</mosaic_0001>

<llo_original>
// kernel: tpu_custom_call.1
$region0: #{tpu_custom_call.1}
  #allocation0 [shape = 'u32[]', space=smem, size = 0x4, offset = 0x4, fixed_abs, tag = 'smem constant byte address 0x4 - core index']
  #allocation1 [shape = 'u32[144,128]{1,0:T(1,128)}', space=vmem, size = 0x12000, scoped, tag = 'internal scratch']
  %s0 = inlined_call_operand.hbm [shape: bf16[8,768], index: 0, kind: input, shape index: {}]
  %s1 = inlined_call_operand.hbm [shape: bf16[8,768], index: 1, kind: input, shape index: {}]
  %s2 = inlined_call_operand.hbm [shape: bf16[768,128], index: 2, kind: input, shape index: {}]
  %s3 = inlined_call_operand.vmem [shape: f32[1,128], index: 3, kind: input, shape index: {}]
  %s4 = inlined_call_operand.hbm [shape: f32[8,128], index: 4, kind: output, shape index: {}]
  %s5 = sld [smem:[#allocation0]]
  $region50: #{tpu_custom_call.1} parent=0
    _
  %s7 = ssub.s32 1, %s5
  %s8 = scalar_select 0, %s7, %s5
  $region1: #{tpu_custom_call.1} parent=0
    #allocation2 [shape = 'u8[12288]{0}', space=vmem, size = 0x3000, scoped, tag = 'input window, operand 0, single buffered']
    #allocation3 [shape = 's32[1]{0}', space=sflag, size = 0x4, scoped, tag = 'scoped memory for tpu_custom_call.1']
    #allocation4 [shape = 's32[1]{0}', space=sflag, size = 0x4, scoped, tag = 'scoped memory for tpu_custom_call.1']
    #allocation5 [shape = 'u8[12288]{0}', space=vmem, size = 0x3000, scoped, tag = 'input window, operand 1, single buffered']
    #allocation6 [shape = 's32[1]{0}', space=sflag, size = 0x4, scoped, tag = 'scoped memory for tpu_custom_call.1']
    #allocation7 [shape = 'u8[196608]{0}', space=vmem, size = 0x30000, scoped, tag = 'input window, operand 2, single buffered']
    #allocation8 [shape = 'u8[4096]{0}', space=vmem, size = 0x1000, scoped, tag = 'output window, operand 0, single buffered']
    %9 = vsyncpa [#allocation3], 0
    %10 = vsyncpa [#allocation6], 0
    %11 = vsyncpa [#allocation4], 0
    // Predicated region
    $region2: #{tpu_custom_call.1} parent=1 // pred_check
      _
    $region3: #{tpu_custom_call.1} parent=1 // pred_check_branch
      %13 = sbr.rel (0) target = $region5
    $region4: #{tpu_custom_call.1} parent=1 // pred_region
      %s15 = ssub.s32 384, 384
      %16 = vsyncadd [#allocation3], %s15
      %s18 = sshll.u32 [#allocation2], 4
      %s19 = int_to_ptr.vmem [resolvable:$true] %s18
      %21 = dma.hbm_to_vmem [thread:$0]  %s0, 384, %s19, [#allocation3]
    $region5: #{tpu_custom_call.1} parent=1 // pred_fallthru
      _
    // Predicated region
    $region6: #{tpu_custom_call.1} parent=1 // pred_check
      _
    $region7: #{tpu_custom_call.1} parent=1 // pred_check_branch
      %23 = sbr.rel (0) target = $region9
    $region8: #{tpu_custom_call.1} parent=1 // pred_region
      %s25 = ssub.s32 384, 384
      %26 = vsyncadd [#allocation6], %s25
      %s28 = sshll.u32 [#allocation5], 4
      %s29 = int_to_ptr.vmem [resolvable:$true] %s28
      %31 = dma.hbm_to_vmem [thread:$0]  %s1, 384, %s29, [#allocation6]
    $region9: #{tpu_custom_call.1} parent=1 // pred_fallthru
      _
    // Predicated region
    $region10: #{tpu_custom_call.1} parent=1 // pred_check
      _
    $region11: #{tpu_custom_call.1} parent=1 // pred_check_branch
      %33 = sbr.rel (0) target = $region13
    $region12: #{tpu_custom_call.1} parent=1 // pred_region
      %s35 = ssub.s32 6144, 6144
      %36 = vsyncadd [#allocation6], %s35
      %s37 = sshll.u32 [#allocation7], 4
      %s38 = int_to_ptr.vmem [resolvable:$true] %s37
      %43 = dma.hbm_to_vmem [thread:$0]  %s2, 6144, %s38, [#allocation6], 64, 64, 4
    $region13: #{tpu_custom_call.1} parent=1 // pred_fallthru
      _
    // Predicated region
    $region14: #{tpu_custom_call.1} parent=1 // pred_check
      _
    $region15: #{tpu_custom_call.1} parent=1 // pred_check_branch
      %45 = sbr.rel (0) target = $region17
    $region16: #{tpu_custom_call.1} parent=1 // pred_region
      _
    $region17: #{tpu_custom_call.1} parent=1 // pred_fallthru
      _
    // Predicated region
    $region18: #{tpu_custom_call.1} parent=1 // pred_check
      _
    $region19: #{tpu_custom_call.1} parent=1 // pred_check_branch
      %47 = sbr.rel (0) target = $region21
    $region20: #{tpu_custom_call.1} parent=1 // pred_region
      %48 = dma.done [#allocation3], 384
    $region21: #{tpu_custom_call.1} parent=1 // pred_fallthru
      _
    // Predicated region
    $region22: #{tpu_custom_call.1} parent=1 // pred_check
      _
    $region23: #{tpu_custom_call.1} parent=1 // pred_check_branch
      %50 = sbr.rel (0) target = $region25
    $region24: #{tpu_custom_call.1} parent=1 // pred_region
      %51 = dma.done [#allocation6], 384
    $region25: #{tpu_custom_call.1} parent=1 // pred_fallthru
      _
    // Predicated region
    $region26: #{tpu_custom_call.1} parent=1 // pred_check
      _
    $region27: #{tpu_custom_call.1} parent=1 // pred_check_branch
      %53 = sbr.rel (0) target = $region29
    $region28: #{tpu_custom_call.1} parent=1 // pred_region
      %54 = dma.done [#allocation6], 6144
    $region29: #{tpu_custom_call.1} parent=1 // pred_fallthru
      _
    %v56 = vld [vmem:[#allocation5] sm:$0xff]
    %v57 = vld [vmem:[#allocation5 + $0x8] sm:$0xff]
    %v58 = vld [vmem:[#allocation5 + $0x10] sm:$0xff]
    %v59 = vunpack.c.l.bf16 %v56
    %v60 = vunpack.c.h.bf16 %v56
    %v61 = vunpack.c.l.bf16 %v57
    %v62 = vunpack.c.h.bf16 %v57
    %v63 = vunpack.c.l.bf16 %v58
    %v64 = vunpack.c.h.bf16 %v58
    %v65 = vmul.f32 %v59, 0.5
    %v66 = vmul.f32 %v60, 0.5
    %v67 = vmul.f32 %v61, 0.5
    %v68 = vmul.f32 %v62, 0.5
    %v69 = vmul.f32 %v63, 0.5
    %v70 = vmul.f32 %v64, 0.5
    %v71 = vtanh.pop %v65
    %v72 = vtanh.pop %v66
    %v73 = vtanh.pop %v67
    %v74 = vtanh.pop %v68
    %v75 = vtanh.pop %v69
    %v76 = vtanh.pop %v70
    %v77 = vmul.f32 %v71, 0.5
    %v78 = vmul.f32 %v72, 0.5
    %v79 = vmul.f32 %v73, 0.5
    %v80 = vmul.f32 %v74, 0.5
    %v81 = vmul.f32 %v75, 0.5
    %v82 = vmul.f32 %v76, 0.5
    %v83 = vadd.f32 %v77, 0.5
    %v84 = vadd.f32 %v78, 0.5
    %v85 = vadd.f32 %v79, 0.5
    %v86 = vadd.f32 %v80, 0.5
    %v87 = vadd.f32 %v81, 0.5
    %v88 = vadd.f32 %v82, 0.5
    %v89 = vld [vmem:[#allocation2] sm:$0xff]
    %v90 = vld [vmem:[#allocation2 + $0x8] sm:$0xff]
    %v91 = vld [vmem:[#allocation2 + $0x10] sm:$0xff]
    %v92 = vunpack.c.l.bf16 %v89
    %v93 = vunpack.c.h.bf16 %v89
    %v94 = vunpack.c.l.bf16 %v90
    %v95 = vunpack.c.h.bf16 %v90
    %v96 = vunpack.c.l.bf16 %v91
    %v97 = vunpack.c.h.bf16 %v91
    %v98 = vmul.f32 %v92, %v83
    %v99 = vmul.f32 %v93, %v84
    %v100 = vmul.f32 %v94, %v85
    %v101 = vmul.f32 %v95, %v86
    %v102 = vmul.f32 %v96, %v87
    %v103 = vmul.f32 %v97, %v88
    %s104 = smul.u32 0, 768
    %s105 = sshra.s32 %s104, 3
    %s106 = sand.u32 %s104, 7
    %s107 = smul.addr %s105, 4
    %s108 = scalar_lea.vmem [#allocation7], %s107
    %v109 = vld [vmem:[%s108] sm:$0xf]
    %v110 = vld [vmem:[%s108 + $0x4] sm:$0xf]
    %v111 = vld [vmem:[%s108 + $0x8] sm:$0xf]
    %v112 = vld [vmem:[%s108 + $0xc] sm:$0xf]
    %v113 = vld [vmem:[%s108 + $0x10] sm:$0xf]
    %v114 = vld [vmem:[%s108 + $0x14] sm:$0xf]
    %v115 = vld [vmem:[%s108 + $0x18] sm:$0xf]
    %v116 = vld [vmem:[%s108 + $0x1c] sm:$0xf]
    %v117 = vld [vmem:[%s108 + $0x20] sm:$0xf]
    %v118 = vld [vmem:[%s108 + $0x24] sm:$0xf]
    %v119 = vld [vmem:[%s108 + $0x28] sm:$0xf]
    %v120 = vld [vmem:[%s108 + $0x2c] sm:$0xf]
    %v121 = vld [vmem:[%s108 + $0x30] sm:$0xf]
    %v122 = vld [vmem:[%s108 + $0x34] sm:$0xf]
    %v123 = vld [vmem:[%s108 + $0x38] sm:$0xf]
    %v124 = vld [vmem:[%s108 + $0x3c] sm:$0xf]
    %v125 = vld [vmem:[%s108 + $0x40] sm:$0xf]
    %v126 = vld [vmem:[%s108 + $0x44] sm:$0xf]
    %v127 = vld [vmem:[%s108 + $0x48] sm:$0xf]
    %v128 = vld [vmem:[%s108 + $0x4c] sm:$0xf]
    %v129 = vld [vmem:[%s108 + $0x50] sm:$0xf]
    %v130 = vld [vmem:[%s108 + $0x54] sm:$0xf]
    %v131 = vld [vmem:[%s108 + $0x58] sm:$0xf]
    %v132 = vld [vmem:[%s108 + $0x5c] sm:$0xf]
    %v133 = vld [vmem:[%s108 + $0x60] sm:$0xf]
    %v134 = vld [vmem:[%s108 + $0x64] sm:$0xf]
    %v135 = vld [vmem:[%s108 + $0x68] sm:$0xf]
    %v136 = vld [vmem:[%s108 + $0x6c] sm:$0xf]
    %v137 = vld [vmem:[%s108 + $0x70] sm:$0xf]
    %v138 = vld [vmem:[%s108 + $0x74] sm:$0xf]
    %v139 = vld [vmem:[%s108 + $0x78] sm:$0xf]
    %v140 = vld [vmem:[%s108 + $0x7c] sm:$0xf]
    %v141 = vld [vmem:[%s108 + $0x80] sm:$0xf]
    %v142 = vld [vmem:[%s108 + $0x84] sm:$0xf]
    %v143 = vld [vmem:[%s108 + $0x88] sm:$0xf]
    %v144 = vld [vmem:[%s108 + $0x8c] sm:$0xf]
    %v145 = vld [vmem:[%s108 + $0x90] sm:$0xf]
    %v146 = vld [vmem:[%s108 + $0x94] sm:$0xf]
    %v147 = vld [vmem:[%s108 + $0x98] sm:$0xf]
    %v148 = vld [vmem:[%s108 + $0x9c] sm:$0xf]
    %v149 = vld [vmem:[%s108 + $0xa0] sm:$0xf]
    %v150 = vld [vmem:[%s108 + $0xa4] sm:$0xf]
    %v151 = vld [vmem:[%s108 + $0xa8] sm:$0xf]
    %v152 = vld [vmem:[%s108 + $0xac] sm:$0xf]
    %v153 = vld [vmem:[%s108 + $0xb0] sm:$0xf]
    %v154 = vld [vmem:[%s108 + $0xb4] sm:$0xf]
    %v155 = vld [vmem:[%s108 + $0xb8] sm:$0xf]
    %v156 = vld [vmem:[%s108 + $0xbc] sm:$0xf]
    %v157 = vld [vmem:[%s108 + $0xc0] sm:$0xf]
    %v158 = vld [vmem:[%s108 + $0xc4] sm:$0xf]
    %v159 = vld [vmem:[%s108 + $0xc8] sm:$0xf]
    %v160 = vld [vmem:[%s108 + $0xcc] sm:$0xf]
    %v161 = vld [vmem:[%s108 + $0xd0] sm:$0xf]
    %v162 = vld [vmem:[%s108 + $0xd4] sm:$0xf]
    %v163 = vld [vmem:[%s108 + $0xd8] sm:$0xf]
    %v164 = vld [vmem:[%s108 + $0xdc] sm:$0xf]
    %v165 = vld [vmem:[%s108 + $0xe0] sm:$0xf]
    %v166 = vld [vmem:[%s108 + $0xe4] sm:$0xf]
    %v167 = vld [vmem:[%s108 + $0xe8] sm:$0xf]
    %v168 = vld [vmem:[%s108 + $0xec] sm:$0xf]
    %v169 = vld [vmem:[%s108 + $0xf0] sm:$0xf]
    %v170 = vld [vmem:[%s108 + $0xf4] sm:$0xf]
    %v171 = vld [vmem:[%s108 + $0xf8] sm:$0xf]
    %v172 = vld [vmem:[%s108 + $0xfc] sm:$0xf]
    %v173 = vld [vmem:[%s108 + $0x100] sm:$0xf]
    %v174 = vld [vmem:[%s108 + $0x104] sm:$0xf]
    %v175 = vld [vmem:[%s108 + $0x108] sm:$0xf]
    %v176 = vld [vmem:[%s108 + $0x10c] sm:$0xf]
    %v177 = vld [vmem:[%s108 + $0x110] sm:$0xf]
    %v178 = vld [vmem:[%s108 + $0x114] sm:$0xf]
    %v179 = vld [vmem:[%s108 + $0x118] sm:$0xf]
    %v180 = vld [vmem:[%s108 + $0x11c] sm:$0xf]
    %v181 = vld [vmem:[%s108 + $0x120] sm:$0xf]
    %v182 = vld [vmem:[%s108 + $0x124] sm:$0xf]
    %v183 = vld [vmem:[%s108 + $0x128] sm:$0xf]
    %v184 = vld [vmem:[%s108 + $0x12c] sm:$0xf]
    %v185 = vld [vmem:[%s108 + $0x130] sm:$0xf]
    %v186 = vld [vmem:[%s108 + $0x134] sm:$0xf]
    %v187 = vld [vmem:[%s108 + $0x138] sm:$0xf]
    %v188 = vld [vmem:[%s108 + $0x13c] sm:$0xf]
    %v189 = vld [vmem:[%s108 + $0x140] sm:$0xf]
    %v190 = vld [vmem:[%s108 + $0x144] sm:$0xf]
    %v191 = vld [vmem:[%s108 + $0x148] sm:$0xf]
    %v192 = vld [vmem:[%s108 + $0x14c] sm:$0xf]
    %v193 = vld [vmem:[%s108 + $0x150] sm:$0xf]
    %v194 = vld [vmem:[%s108 + $0x154] sm:$0xf]
    %v195 = vld [vmem:[%s108 + $0x158] sm:$0xf]
    %v196 = vld [vmem:[%s108 + $0x15c] sm:$0xf]
    %v197 = vld [vmem:[%s108 + $0x160] sm:$0xf]
    %v198 = vld [vmem:[%s108 + $0x164] sm:$0xf]
    %v199 = vld [vmem:[%s108 + $0x168] sm:$0xf]
    %v200 = vld [vmem:[%s108 + $0x16c] sm:$0xf]
    %v201 = vld [vmem:[%s108 + $0x170] sm:$0xf]
    %v202 = vld [vmem:[%s108 + $0x174] sm:$0xf]
    %v203 = vld [vmem:[%s108 + $0x178] sm:$0xf]
    %v204 = vld [vmem:[%s108 + $0x17c] sm:$0xf]
    %v205 = vpack.c.bf16 %v98, %v98
    %v206 = vpack.c.bf16 %v99, %v99
    %v207 = vpack.c.bf16 %v100, %v100
    %v208 = vpack.c.bf16 %v101, %v101
    %v209 = vpack.c.bf16 %v102, %v102
    %v210 = vpack.c.bf16 %v103, %v103
    %v307 = vunpack.c.l.b16 %v109
    %v308 = vunpack.c.l.b16 %v110
    %v309 = vunpack.c.l.b16 %v111
    %v310 = vunpack.c.l.b16 %v112
    %v311 = vunpack.c.l.b16 %v113
    %v312 = vunpack.c.l.b16 %v114
    %v313 = vunpack.c.l.b16 %v115
    %v314 = vunpack.c.l.b16 %v116
    %v315 = vunpack.c.l.b16 %v117
    %v316 = vunpack.c.l.b16 %v118
    %v317 = vunpack.c.l.b16 %v119
    %v318 = vunpack.c.l.b16 %v120
    %v319 = vunpack.c.l.b16 %v121
    %v320 = vunpack.c.l.b16 %v122
    %v321 = vunpack.c.l.b16 %v123
    %v322 = vunpack.c.l.b16 %v124
    %v323 = vunpack.c.l.b16 %v125
    %v324 = vunpack.c.l.b16 %v126
    %v325 = vunpack.c.l.b16 %v127
    %v326 = vunpack.c.l.b16 %v128
    %v327 = vunpack.c.l.b16 %v129
    %v328 = vunpack.c.l.b16 %v130
    %v329 = vunpack.c.l.b16 %v131
    %v330 = vunpack.c.l.b16 %v132
    %v331 = vunpack.c.l.b16 %v133
    %v332 = vunpack.c.l.b16 %v134
    %v333 = vunpack.c.l.b16 %v135
    %v334 = vunpack.c.l.b16 %v136
    %v335 = vunpack.c.l.b16 %v137
    %v336 = vunpack.c.l.b16 %v138
    %v337 = vunpack.c.l.b16 %v139
    %v338 = vunpack.c.l.b16 %v140
    %v339 = vunpack.c.l.b16 %v141
    %v340 = vunpack.c.l.b16 %v142
    %v341 = vunpack.c.l.b16 %v143
    %v342 = vunpack.c.l.b16 %v144
    %v343 = vunpack.c.l.b16 %v145
    %v344 = vunpack.c.l.b16 %v146
    %v345 = vunpack.c.l.b16 %v147
    %v346 = vunpack.c.l.b16 %v148
    %v347 = vunpack.c.l.b16 %v149
    %v348 = vunpack.c.l.b16 %v150
    %v349 = vunpack.c.l.b16 %v151
    %v350 = vunpack.c.l.b16 %v152
    %v351 = vunpack.c.l.b16 %v153
    %v352 = vunpack.c.l.b16 %v154
    %v353 = vunpack.c.l.b16 %v155
    %v354 = vunpack.c.l.b16 %v156
    %v355 = vunpack.c.l.b16 %v157
    %v356 = vunpack.c.l.b16 %v158
    %v357 = vunpack.c.l.b16 %v159
    %v358 = vunpack.c.l.b16 %v160
    %v359 = vunpack.c.l.b16 %v161
    %v360 = vunpack.c.l.b16 %v162
    %v361 = vunpack.c.l.b16 %v163
    %v362 = vunpack.c.l.b16 %v164
    %v363 = vunpack.c.l.b16 %v165
    %v364 = vunpack.c.l.b16 %v166
    %v365 = vunpack.c.l.b16 %v167
    %v366 = vunpack.c.l.b16 %v168
    %v367 = vunpack.c.l.b16 %v169
    %v368 = vunpack.c.l.b16 %v170
    %v369 = vunpack.c.l.b16 %v171
    %v370 = vunpack.c.l.b16 %v172
    %v371 = vunpack.c.l.b16 %v173
    %v372 = vunpack.c.l.b16 %v174
    %v373 = vunpack.c.l.b16 %v175
    %v374 = vunpack.c.l.b16 %v176
    %v375 = vunpack.c.l.b16 %v177
    %v376 = vunpack.c.l.b16 %v178
    %v377 = vunpack.c.l.b16 %v179
    %v378 = vunpack.c.l.b16 %v180
    %v379 = vunpack.c.l.b16 %v181
    %v380 = vunpack.c.l.b16 %v182
    %v381 = vunpack.c.l.b16 %v183
    %v382 = vunpack.c.l.b16 %v184
    %v383 = vunpack.c.l.b16 %v185
    %v384 = vunpack.c.l.b16 %v186
    %v385 = vunpack.c.l.b16 %v187
    %v386 = vunpack.c.l.b16 %v188
    %v387 = vunpack.c.l.b16 %v189
    %v388 = vunpack.c.l.b16 %v190
    %v389 = vunpack.c.l.b16 %v191
    %v390 = vunpack.c.l.b16 %v192
    %v391 = vunpack.c.l.b16 %v193
    %v392 = vunpack.c.l.b16 %v194
    %v393 = vunpack.c.l.b16 %v195
    %v394 = vunpack.c.l.b16 %v196
    %v395 = vunpack.c.l.b16 %v197
    %v396 = vunpack.c.l.b16 %v198
    %v397 = vunpack.c.l.b16 %v199
    %v398 = vunpack.c.l.b16 %v200
    %v399 = vunpack.c.l.b16 %v201
    %v400 = vunpack.c.l.b16 %v202
    %v401 = vunpack.c.l.b16 %v203
    %v402 = vunpack.c.l.b16 %v204
    %v403 = vpack.c.b16 %v308, %v307
    %v404 = vpack.c.b16 %v310, %v309
    %v405 = vpack.c.b16 %v312, %v311
    %v406 = vpack.c.b16 %v314, %v313
    %v407 = vpack.c.b16 %v316, %v315
    %v408 = vpack.c.b16 %v318, %v317
    %v409 = vpack.c.b16 %v320, %v319
    %v410 = vpack.c.b16 %v322, %v321
    %v411 = vpack.c.b16 %v324, %v323
    %v412 = vpack.c.b16 %v326, %v325
    %v413 = vpack.c.b16 %v328, %v327
    %v414 = vpack.c.b16 %v330, %v329
    %v415 = vpack.c.b16 %v332, %v331
    %v416 = vpack.c.b16 %v334, %v333
    %v417 = vpack.c.b16 %v336, %v335
    %v418 = vpack.c.b16 %v338, %v337
    %v419 = vpack.c.b16 %v340, %v339
    %v420 = vpack.c.b16 %v342, %v341
    %v421 = vpack.c.b16 %v344, %v343
    %v422 = vpack.c.b16 %v346, %v345
    %v423 = vpack.c.b16 %v348, %v347
    %v424 = vpack.c.b16 %v350, %v349
    %v425 = vpack.c.b16 %v352, %v351
    %v426 = vpack.c.b16 %v354, %v353
    %v427 = vpack.c.b16 %v356, %v355
    %v428 = vpack.c.b16 %v358, %v357
    %v429 = vpack.c.b16 %v360, %v359
    %v430 = vpack.c.b16 %v362, %v361
    %v431 = vpack.c.b16 %v364, %v363
    %v432 = vpack.c.b16 %v366, %v365
    %v433 = vpack.c.b16 %v368, %v367
    %v434 = vpack.c.b16 %v370, %v369
    %v435 = vpack.c.b16 %v372, %v371
    %v436 = vpack.c.b16 %v374, %v373
    %v437 = vpack.c.b16 %v376, %v375
    %v438 = vpack.c.b16 %v378, %v377
    %v439 = vpack.c.b16 %v380, %v379
    %v440 = vpack.c.b16 %v382, %v381
    %v441 = vpack.c.b16 %v384, %v383
    %v442 = vpack.c.b16 %v386, %v385
    %v443 = vpack.c.b16 %v388, %v387
    %v444 = vpack.c.b16 %v390, %v389
    %v445 = vpack.c.b16 %v392, %v391
    %v446 = vpack.c.b16 %v394, %v393
    %v447 = vpack.c.b16 %v396, %v395
    %v448 = vpack.c.b16 %v398, %v397
    %v449 = vpack.c.b16 %v400, %v399
    %v450 = vpack.c.b16 %v402, %v401
    %499 = vmatprep.subr.bf16.mxu0 0
    %500 = vmatpush1.bf16.msra.mxu0 %v410
    %501 = vmatprep.subr.bf16.mxu0 0
    %502 = vmatpush1.bf16.msra.mxu0 %v409
    %503 = vmatprep.subr.bf16.mxu0 0
    %504 = vmatpush1.bf16.msra.mxu0 %v408
    %505 = vmatprep.subr.bf16.mxu0 0
    %506 = vmatpush1.bf16.msra.mxu0 %v407
    %507 = vmatprep.subr.bf16.mxu0 0
    %508 = vmatpush1.bf16.msra.mxu0 %v406
    %509 = vmatprep.subr.bf16.mxu0 0
    %510 = vmatpush1.bf16.msra.mxu0 %v405
    %511 = vmatprep.subr.bf16.mxu0 0
    %512 = vmatpush1.bf16.msra.mxu0 %v404
    %513 = vmatprep.subr.bf16.mxu0 0
    %514 = vmatpush1.bf16.msra.mxu0 %v403
    %515 = vmatprep.subr.bf16.mxu0 0
    %516 = vmatpush2.bf16.msra.mxu0 %v418
    %517 = vmatprep.subr.bf16.mxu0 0
    %518 = vmatpush2.bf16.msra.mxu0 %v417
    %519 = vmatprep.subr.bf16.mxu0 0
    %520 = vmatpush2.bf16.msra.mxu0 %v416
    %521 = vmatprep.subr.bf16.mxu0 0
    %522 = vmatpush2.bf16.msra.mxu0 %v415
    %523 = vmatprep.subr.bf16.mxu0 0
    %524 = vmatpush2.bf16.msra.mxu0 %v414
    %525 = vmatprep.subr.bf16.mxu0 0
    %526 = vmatpush2.bf16.msra.mxu0 %v413
    %527 = vmatprep.subr.bf16.mxu0 0
    %528 = vmatpush2.bf16.msra.mxu0 %v412
    %529 = vmatprep.subr.bf16.mxu0 0
    %530 = vmatpush2.bf16.msra.mxu0 %v411
    %531 = vmatprep.mubr.bf16.mxu0 %v206
    %532 = vmatmul.mubr.bf16.gmra.mxu0 %v205
    %v533 = vpop.f32.mrf.mxu0
    %v534 = vadd.f32 0.0, %v533
    %v535 = vpop.f32.mrf.mxu0
    %v536 = vpop.f32.mrf.mxu0
    %v537 = vpop.f32.mrf.mxu0
    %538 = vdwg.mxu0
    %539 = vmatprep.subr.bf16.mxu0 0
    %540 = vmatpush1.bf16.msra.mxu0 %v426
    %541 = vmatprep.subr.bf16.mxu0 0
    %542 = vmatpush1.bf16.msra.mxu0 %v425
    %543 = vmatprep.subr.bf16.mxu0 0
    %544 = vmatpush1.bf16.msra.mxu0 %v424
    %545 = vmatprep.subr.bf16.mxu0 0
    %546 = vmatpush1.bf16.msra.mxu0 %v423
    %547 = vmatprep.subr.bf16.mxu0 0
    %548 = vmatpush1.bf16.msra.mxu0 %v422
    %549 = vmatprep.subr.bf16.mxu0 0
    %550 = vmatpush1.bf16.msra.mxu0 %v421
    %551 = vmatprep.subr.bf16.mxu0 0
    %552 = vmatpush1.bf16.msra.mxu0 %v420
    %553 = vmatprep.subr.bf16.mxu0 0
    %554 = vmatpush1.bf16.msra.mxu0 %v419
    %555 = vmatprep.subr.bf16.mxu0 0
    %556 = vmatpush2.bf16.msra.mxu0 %v434
    %557 = vmatprep.subr.bf16.mxu0 0
    %558 = vmatpush2.bf16.msra.mxu0 %v433
    %559 = vmatprep.subr.bf16.mxu0 0
    %560 = vmatpush2.bf16.msra.mxu0 %v432
    %561 = vmatprep.subr.bf16.mxu0 0
    %562 = vmatpush2.bf16.msra.mxu0 %v431
    %563 = vmatprep.subr.bf16.mxu0 0
    %564 = vmatpush2.bf16.msra.mxu0 %v430
    %565 = vmatprep.subr.bf16.mxu0 0
    %566 = vmatpush2.bf16.msra.mxu0 %v429
    %567 = vmatprep.subr.bf16.mxu0 0
    %568 = vmatpush2.bf16.msra.mxu0 %v428
    %569 = vmatprep.subr.bf16.mxu0 0
    %570 = vmatpush2.bf16.msra.mxu0 %v427
    %571 = vmatprep.mubr.bf16.mxu0 %v208
    %572 = vmatmul.mubr.bf16.gmra.mxu0 %v207
    %v573 = vpop.f32.mrf.mxu0
    %v574 = vadd.f32 %v534, %v573
    %v575 = vpop.f32.mrf.mxu0
    %v576 = vpop.f32.mrf.mxu0
    %v577 = vpop.f32.mrf.mxu0
    %578 = vdwg.mxu0
    %579 = vmatprep.subr.bf16.mxu0 0
    %580 = vmatpush1.bf16.msra.mxu0 %v442
    %581 = vmatprep.subr.bf16.mxu0 0
    %582 = vmatpush1.bf16.msra.mxu0 %v441
    %583 = vmatprep.subr.bf16.mxu0 0
    %584 = vmatpush1.bf16.msra.mxu0 %v440
    %585 = vmatprep.subr.bf16.mxu0 0
    %586 = vmatpush1.bf16.msra.mxu0 %v439
    %587 = vmatprep.subr.bf16.mxu0 0
    %588 = vmatpush1.bf16.msra.mxu0 %v438
    %589 = vmatprep.subr.bf16.mxu0 0
    %590 = vmatpush1.bf16.msra.mxu0 %v437
    %591 = vmatprep.subr.bf16.mxu0 0
    %592 = vmatpush1.bf16.msra.mxu0 %v436
    %593 = vmatprep.subr.bf16.mxu0 0
    %594 = vmatpush1.bf16.msra.mxu0 %v435
    %595 = vmatprep.subr.bf16.mxu0 0
    %596 = vmatpush2.bf16.msra.mxu0 %v450
    %597 = vmatprep.subr.bf16.mxu0 0
    %598 = vmatpush2.bf16.msra.mxu0 %v449
    %599 = vmatprep.subr.bf16.mxu0 0
    %600 = vmatpush2.bf16.msra.mxu0 %v448
    %601 = vmatprep.subr.bf16.mxu0 0
    %602 = vmatpush2.bf16.msra.mxu0 %v447
    %603 = vmatprep.subr.bf16.mxu0 0
    %604 = vmatpush2.bf16.msra.mxu0 %v446
    %605 = vmatprep.subr.bf16.mxu0 0
    %606 = vmatpush2.bf16.msra.mxu0 %v445
    %607 = vmatprep.subr.bf16.mxu0 0
    %608 = vmatpush2.bf16.msra.mxu0 %v444
    %609 = vmatprep.subr.bf16.mxu0 0
    %610 = vmatpush2.bf16.msra.mxu0 %v443
    %611 = vmatprep.mubr.bf16.mxu0 %v210
    %612 = vmatmul.mubr.bf16.gmra.mxu0 %v209
    %v613 = vpop.f32.mrf.mxu0
    %v614 = vadd.f32 %v574, %v613
    %v615 = vpop.f32.mrf.mxu0
    %v616 = vpop.f32.mrf.mxu0
    %v617 = vpop.f32.mrf.mxu0
    %618 = vdwg.mxu0
    %p619 = scmp.eq.s32.totalorder 0, 0
    // Predicated region
    $region30: #{tpu_custom_call.1} parent=1 // pred_check
      %p620 = pneg %p619
    $region31: #{tpu_custom_call.1} parent=1 // pred_check_branch
      %622 = sbr.rel (%p620) target = $region33
    $region32: #{tpu_custom_call.1} parent=1 // pred_region
      %623 = vst [vmem:[#allocation8] sm:$0xff] %v614
    $region33: #{tpu_custom_call.1} parent=1 // pred_fallthru
      _
    %p624 = scmp.gt.s32.totalorder 0, 0
    // Predicated region
    $region34: #{tpu_custom_call.1} parent=1 // pred_check
      %p625 = pneg %p624
    $region35: #{tpu_custom_call.1} parent=1 // pred_check_branch
      %627 = sbr.rel (%p625) target = $region37
    $region36: #{tpu_custom_call.1} parent=1 // pred_region
      %v628 = vld [vmem:[#allocation8] sm:$0xff]
      %v629 = vadd.f32 %v628, %v614
      %630 = vst [vmem:[#allocation8] sm:$0xff] %v629
    $region37: #{tpu_custom_call.1} parent=1 // pred_fallthru
      _
    // Predicated region
    $region38: #{tpu_custom_call.1} parent=1 // pred_check
      %p631 = pneg %p619
    $region39: #{tpu_custom_call.1} parent=1 // pred_check_branch
      %633 = sbr.rel (%p631) target = $region41
    $region40: #{tpu_custom_call.1} parent=1 // pred_region
      %v634 = vld [vmem:[#allocation8] sm:$0xff]
      %v635 = vld [vmem:[%s3] sm:$0x1]
      %v637 = vlaneseq
      %v638 = vshrl.u32 %v637, 7
      %v639 = vsub.s32 0, %v638
      %v640 = vrot.slane %v635, %v639
      %v642 = vadd.f32 %v634, %v640
      %643 = vmax.xlane.f32.xlu0 %v642
      %v644 = vpop.xlane.xlu0 %643
      %v645 = vsub.f32 %v642, %v644
      %v646 = vmul.f32 %v645, 1.442695
      %v647 = vpow.pop %v646
      %648 = vadd.xlane.f32.xlu0 %v647
      %v649 = vpop.xlane.xlu0 %648
      %v650 = vrcp.pop %v649
      %v651 = vmul.f32 %v647, %v650
      %652 = vst [vmem:[#allocation8] sm:$0xff] %v651
    $region41: #{tpu_custom_call.1} parent=1 // pred_fallthru
      _
    // Predicated region
    $region42: #{tpu_custom_call.1} parent=1 // pred_check
      _
    $region43: #{tpu_custom_call.1} parent=1 // pred_check_branch
      %654 = sbr.rel (0) target = $region45
    $region44: #{tpu_custom_call.1} parent=1 // pred_region
      %s656 = ssub.s32 128, 128
      %657 = vsyncadd [#allocation4], %s656
      %s659 = sshll.u32 [#allocation8], 4
      %s660 = int_to_ptr.vmem [resolvable:$true] %s659
      %662 = dma.vmem_to_hbm [thread:$0]  %s660, 128, %s4, [#allocation4]
    $region45: #{tpu_custom_call.1} parent=1 // pred_fallthru
      _
    // Predicated region
    $region46: #{tpu_custom_call.1} parent=1 // pred_check
      _
    $region47: #{tpu_custom_call.1} parent=1 // pred_check_branch
      %664 = sbr.rel (0) target = $region49
    $region48: #{tpu_custom_call.1} parent=1 // pred_region
      %665 = dma.done [#allocation4], 128
    $region49: #{tpu_custom_call.1} parent=1 // pred_fallthru
      _
    %666 = vsyncpa [#allocation3], 1
    %667 = vsyncpa [#allocation6], 1
    %668 = vsyncpa [#allocation4], 1

</llo_original>
